<compile_context>
chip_gen: v6e
topology: v6e:2x2x1
jax: 0.10.0
libtpu: 0.0.40
codegen_flags: <defaults>
</compile_context>

<pallas_src>
import functools
import math

import jax
import jax.numpy as jnp
from jax import lax
from jax.experimental import pallas as pl
from jax.experimental.pallas import tpu as pltpu


# --------------------------------------------------------------------------
# Fast path: stride == 1 and Wo == W ('same' horizontal padding).
# One grid step per batch element computes the full (Cout, Ho*Wo) slab.
# --------------------------------------------------------------------------
def _sepconv_flat_kernel(x_ref, dww_ref, pw_ref, o_ref, xflat_scr, *,
                         cin, kh, kw, padding, dilation, h, w, ho, wo, base):
    # x_ref     : (1, Cin, H*W)    VMEM  flat input image
    # dww_ref   : (Cin, KH*KW)     VMEM  depthwise weights (one column per tap)
    # pw_ref    : (Cout, Cin)      VMEM  pointwise weight matrix
    # o_ref     : (1, Cout, Ho*Wo) VMEM  lane-dense output slab
    # xflat_scr : (Cin, total)     VMEM  flat image with zero margins
    li = h * w
    lo = ho * wo

    # In-kernel zero padding: zero the margins, then one aligned, unmasked
    # store of the image at lane offset `base` (a multiple of 128).
    xflat_scr[...] = jnp.zeros_like(xflat_scr)
    xflat_scr[:, base:base + li] = x_ref[0].astype(jnp.float32)

    # Flat output-pixel index p = i*W + j (2-D iota over lanes), used to build
    # the per-tap boundary masks once; reused by every channel.
    p = lax.broadcasted_iota(jnp.int32, (1, lo), 1)
    if (w & (w - 1)) == 0:
        col = jnp.bitwise_and(p, w - 1)                       # j = p mod W
    else:
        pf = p.astype(jnp.float32)
        col = (pf - w * jnp.floor((pf + 0.5) * (1.0 / w))).astype(jnp.int32)

    masks = []
    for ki in range(kh):
        for kj in range(kw):
            dh = ki * dilation - padding
            dj = kj * dilation - padding
            cond = None
            if dh < 0 or (ho - 1) + dh > h - 1:      # rows falling off the image
                cond = (p >= (-dh) * w) & (p < (h - dh) * w)
            if dj < 0 or (wo - 1) + dj > w - 1:      # cols falling off the image
                c = (col >= -dj) & (col < w - dj)
                cond = c if cond is None else (cond & c)
            masks.append(None if cond is None else cond.astype(jnp.float32))

    # Depthwise: a single lane-dense (Cin, Ho*Wo) f32 accumulator for all
    # channels.  Each tap = one contiguous ref-level slice (load unit absorbs
    # the (ki,kj) shift), an optional boundary-mask multiply and one FMA with
    # the (Cin,1) weight column broadcast along lanes.
    acc = jnp.zeros((cin, lo), jnp.float32)
    for ki in range(kh):
        for kj in range(kw):
            t = ki * kw + kj
            off = (ki * dilation - padding) * w + (kj * dilation - padding)
            patch = xflat_scr[:, base + off:base + off + lo]   # (Cin, Ho*Wo)
            if masks[t] is not None:
                patch = patch * masks[t]
            acc = acc + dww_ref[:, t:t + 1] * patch

    # Pointwise 1x1 on the MXU: (Cout, Cin) @ (Cin, Ho*Wo); the result is the
    # final output slab, written back with one lane-dense, unmasked store.
    out = jnp.dot(pw_ref[...], acc, preferred_element_type=jnp.float32,
                  precision=lax.Precision.HIGHEST)
    o_ref[0] = out.astype(o_ref.dtype)


# --------------------------------------------------------------------------
# General fallback (stride > 1 or non-'same' padding): correctness-first,
# not perf-tuned.  In-kernel padding + ref-level tap slices, VPU pointwise.
# --------------------------------------------------------------------------
def _sepconv_general_kernel(x_ref, dww_ref, pww_ref, o_ref, xpad_scr, *,
                            cin, cout, kh, kw, stride, padding, dilation,
                            h, w, ho, wo):
    xpad_scr[...] = jnp.zeros_like(xpad_scr)
    xpad_scr[:, padding:padding + h, padding:padding + w] = (
        x_ref[0].astype(jnp.float32))
    acc = [jnp.zeros((ho, wo), jnp.float32) for _ in range(cout)]
    for ci in range(cin):
        dw = jnp.zeros((ho, wo), jnp.float32)
        for ki in range(kh):
            for kj in range(kw):
                h0, w0 = ki * dilation, kj * dilation
                if stride == 1:
                    patch = xpad_scr[ci, h0:h0 + ho, w0:w0 + wo]
                else:
                    # TODO(synk): prefer pl.ds(..., stride=...) ref slicing;
                    # value-level stride select kept as a safe fallback.
                    patch = xpad_scr[ci,
                                     h0:h0 + (ho - 1) * stride + 1,
                                     w0:w0 + (wo - 1) * stride + 1]
                    patch = patch[::stride, ::stride]
                dw = dw + dww_ref[(ci * kh + ki) * kw + kj] * patch
        for co in range(cout):
            acc[co] = acc[co] + pww_ref[co * cin + ci] * dw
    for co in range(cout):
        o_ref[0, co] = acc[co].astype(o_ref.dtype)


# --------------------------------------------------------------------------
# Wrapper
# --------------------------------------------------------------------------
def separable_conv(x, dw_w, pw_w, *, stride=1, padding=0, dilation=1):
    """x: (N, Cin, H, W); dw_w: (Cin, 1, KH, KW); pw_w: (Cout, Cin, 1, 1)."""
    n, cin, h, w = x.shape
    kh, kw = dw_w.shape[2], dw_w.shape[3]
    cout = pw_w.shape[0]
    ho = (h + 2 * padding - dilation * (kh - 1) - 1) // stride + 1
    wo = (w + 2 * padding - dilation * (kw - 1) - 1) // stride + 1

    if stride == 1 and wo == w:
        # ---------------- fast flat (lane-dense) path ----------------
        li, lo = h * w, ho * wo
        off_min = -(padding * w + padding)
        off_max = ((kh - 1) * dilation - padding) * w + \
                  ((kw - 1) * dilation - padding)
        base = ((max(0, -off_min) + 127) // 128) * 128   # 128-aligned image base
        total = base + max(li, off_max + lo)
        kern = functools.partial(
            _sepconv_flat_kernel, cin=cin, kh=kh, kw=kw, padding=padding,
            dilation=dilation, h=h, w=w, ho=ho, wo=wo, base=base)
        out_flat = pl.pallas_call(
            kern,
            out_shape=jax.ShapeDtypeStruct((n, cout, lo), jnp.float32),
            grid=(n,),
            in_specs=[
                pl.BlockSpec((1, cin, li), lambda i: (i, 0, 0)),
                pl.BlockSpec((cin, kh * kw), lambda i: (0, 0)),
                pl.BlockSpec((cout, cin), lambda i: (0, 0)),
            ],
            out_specs=pl.BlockSpec((1, cout, lo), lambda i: (i, 0, 0)),
            scratch_shapes=[pltpu.VMEM((cin, total), jnp.float32)],
            compiler_params=pltpu.CompilerParams(
                dimension_semantics=("parallel",)),
        )(x.reshape(n, cin, li), dw_w.reshape(cin, kh * kw),
          pw_w.reshape(cout, cin))
        # Free row-major metadata reshape back to NCHW.
        return out_flat.reshape(n, cout, ho, wo)

    # ---------------- general fallback path ----------------
    hp, wp = h + 2 * padding, w + 2 * padding
    kern = functools.partial(
        _sepconv_general_kernel, cin=cin, cout=cout, kh=kh, kw=kw,
        stride=stride, padding=padding, dilation=dilation,
        h=h, w=w, ho=ho, wo=wo)
    return pl.pallas_call(
        kern,
        out_shape=jax.ShapeDtypeStruct((n, cout, ho, wo), jnp.float32),
        grid=(n,),
        in_specs=[
            pl.BlockSpec((1, cin, h, w), lambda i: (i, 0, 0, 0)),
            pl.BlockSpec(memory_space=pltpu.MemorySpace.SMEM),
            pl.BlockSpec(memory_space=pltpu.MemorySpace.SMEM),
        ],
        out_specs=pl.BlockSpec((1, cout, ho, wo), lambda i: (i, 0, 0, 0)),
        scratch_shapes=[pltpu.VMEM((cin, hp, wp), jnp.float32)],
        compiler_params=pltpu.CompilerParams(
            dimension_semantics=("parallel",)),
    )(x, dw_w.reshape(-1), pw_w.reshape(-1))


# --------------------------------------------------------------------------
# Pure-JAX reference (matches PyTorch SeparableConv.forward semantics).
# --------------------------------------------------------------------------
def reference_forward(x, dw_w, pw_w, *, stride=1, padding=0, dilation=1):
    cin = x.shape[1]
    dw = lax.conv_general_dilated(
        x, dw_w, (stride, stride),
        [(padding, padding), (padding, padding)],
        rhs_dilation=(dilation, dilation),
        dimension_numbers=("NCHW", "OIHW", "NCHW"),
        feature_group_count=cin,
        precision=lax.Precision.HIGHEST)
    return lax.conv_general_dilated(
        dw, pw_w, (1, 1), "VALID",
        dimension_numbers=("NCHW", "OIHW", "NCHW"),
        precision=lax.Precision.HIGHEST)


def init_params(key, cin, cout, k):
    k1, k2 = jax.random.split(key)
    # PyTorch Conv2d default init: U(-1/sqrt(fan_in), 1/sqrt(fan_in)).
    b_dw = 1.0 / math.sqrt(1 * k * k)    # depthwise: groups=Cin -> fan_in = k*k
    b_pw = 1.0 / math.sqrt(cin * 1 * 1)  # pointwise 1x1: fan_in = Cin
    dw_w = jax.random.uniform(k1, (cin, 1, k, k), jnp.float32, -b_dw, b_dw)
    pw_w = jax.random.uniform(k2, (cout, cin, 1, 1), jnp.float32, -b_pw, b_pw)
    return dw_w, pw_w


if __name__ == "__main__":
    key = jax.random.PRNGKey(0)
    pkey, xkey = jax.random.split(key)

    # SeparableConv(input_channel=4, output_channel=8, kernel_size=3,
    #               stride=1, padding=1, dilation=1, bias=False)
    N, CIN, COUT, H, W, K = 2, 4, 8, 16, 16, 3
    STRIDE, PADDING, DILATION = 1, 1, 1

    dw_w, pw_w = init_params(pkey, CIN, COUT, K)
    x = jax.random.normal(xkey, (N, CIN, H, W), jnp.float32)

    fwd = jax.jit(functools.partial(separable_conv, stride=STRIDE,
                                    padding=PADDING, dilation=DILATION))
    out = jax.block_until_ready(fwd(x, dw_w, pw_w))
    assert out.shape == (N, COUT, H, W) and out.dtype == jnp.float32

    ref_fn = jax.jit(functools.partial(reference_forward, stride=STRIDE,
                                       padding=PADDING, dilation=DILATION))
    ref = jax.block_until_ready(ref_fn(x, dw_w, pw_w))
    # Tolerance slightly loosened vs. the pure-VPU version: the 1x1 pointwise
    # now runs on the MXU (expected tiny rounding delta, per perf review).
    assert jnp.allclose(out, ref, rtol=1e-3, atol=1e-3), (
        float(jnp.max(jnp.abs(out - ref))))

    print("KERNEL_OK")
</pallas_src>

<mosaic_0001>
module attributes {stable_mosaic.version = 11 : i64} {
  func.func @_sepconv_flat_kernel(%arg0: i32, %arg1: memref<1x4x256xf32, #tpu.memory_space<vmem>>, %arg2: memref<4x9xf32, #tpu.memory_space<vmem>>, %arg3: memref<8x4xf32, #tpu.memory_space<vmem>>, %arg4: memref<1x8x256xf32, #tpu.memory_space<vmem>>, %arg5: memref<4x401xf32, #tpu.memory_space<vmem>>) attributes {dimension_semantics = [#tpu.dimension_semantics<parallel>], iteration_bounds = array<i64: 2>, scalar_prefetch = 0 : i64, scratch_operands = 1 : i64, tpu.core_type = #tpu.core_type<tc>, window_params = [{transform_indices = @transform_0, window_bounds = array<i64: 1, 4, 256>}, {pipeline_mode = #tpu.pipeline_mode<synchronous>, transform_indices = @transform_1, window_bounds = array<i64: 4, 9>}, {pipeline_mode = #tpu.pipeline_mode<synchronous>, transform_indices = @transform_2, window_bounds = array<i64: 8, 4>}, {transform_indices = @transform_3, window_bounds = array<i64: 1, 8, 256>}]} {
    %cst = arith.constant 0.000000e+00 : f32
    %0 = vector.broadcast %cst : f32 to vector<4x401xf32>
    %c0 = arith.constant 0 : index
    %c0_0 = arith.constant 0 : index
    %1 = vector.load %arg5[%c0, %c0_0] : memref<4x401xf32, #tpu.memory_space<vmem>>, vector<4x401xf32>
    tpu.vector_store %arg5[%c0, %c0_0], %0 {strides = array<i32>} : memref<4x401xf32, #tpu.memory_space<vmem>>, vector<4x401xf32>,
    %c0_1 = arith.constant 0 : index
    %c0_2 = arith.constant 0 : index
    %c0_3 = arith.constant 0 : index
    %2 = vector.load %arg1[%c0_1, %c0_2, %c0_3] : memref<1x4x256xf32, #tpu.memory_space<vmem>>, vector<1x4x256xf32>
    %3 = vector.shape_cast %2 : vector<1x4x256xf32> to vector<4x256xf32>
    %c0_4 = arith.constant 0 : index
    %c128 = arith.constant 128 : index
    %4 = vector.load %arg5[%c0_4, %c128] : memref<4x401xf32, #tpu.memory_space<vmem>>, vector<4x256xf32>
    tpu.vector_store %arg5[%c0_4, %c128], %3 {strides = array<i32>} : memref<4x401xf32, #tpu.memory_space<vmem>>, vector<4x256xf32>,
    %5 = tpu.iota {dimensions = array<i32: 1>} : vector<1x256xi32>
    %c15_i32 = arith.constant 15 : i32
    %6 = vector.broadcast %c15_i32 : i32 to vector<1x256xi32>
    %7 = arith.andi %5, %6 : vector<1x256xi32>
    %c16_i32 = arith.constant 16 : i32
    %8 = vector.broadcast %c16_i32 : i32 to vector<1x256xi32>
    %9 = arith.cmpi sge, %5, %8 : vector<1x256xi32>
    %c272_i32 = arith.constant 272 : i32
    %10 = vector.broadcast %c272_i32 : i32 to vector<1x256xi32>
    %11 = arith.cmpi slt, %5, %10 : vector<1x256xi32>
    %12 = arith.andi %9, %11 : vector<1x256xi1>
    %c1_i32 = arith.constant 1 : i32
    %13 = vector.broadcast %c1_i32 : i32 to vector<1x256xi32>
    %14 = arith.cmpi sge, %7, %13 : vector<1x256xi32>
    %c17_i32 = arith.constant 17 : i32
    %15 = vector.broadcast %c17_i32 : i32 to vector<1x256xi32>
    %16 = arith.cmpi slt, %7, %15 : vector<1x256xi32>
    %17 = arith.andi %14, %16 : vector<1x256xi1>
    %18 = arith.andi %12, %17 : vector<1x256xi1>
    %19 = arith.extui %18 : vector<1x256xi1> to vector<1x256xi32>
    %20 = arith.sitofp %19 : vector<1x256xi32> to vector<1x256xf32>
    %c16_i32_5 = arith.constant 16 : i32
    %21 = vector.broadcast %c16_i32_5 : i32 to vector<1x256xi32>
    %22 = arith.cmpi sge, %5, %21 : vector<1x256xi32>
    %c272_i32_6 = arith.constant 272 : i32
    %23 = vector.broadcast %c272_i32_6 : i32 to vector<1x256xi32>
    %24 = arith.cmpi slt, %5, %23 : vector<1x256xi32>
    %25 = arith.andi %22, %24 : vector<1x256xi1>
    %26 = arith.extui %25 : vector<1x256xi1> to vector<1x256xi32>
    %27 = arith.sitofp %26 : vector<1x256xi32> to vector<1x256xf32>
    %c16_i32_7 = arith.constant 16 : i32
    %28 = vector.broadcast %c16_i32_7 : i32 to vector<1x256xi32>
    %29 = arith.cmpi sge, %5, %28 : vector<1x256xi32>
    %c272_i32_8 = arith.constant 272 : i32
    %30 = vector.broadcast %c272_i32_8 : i32 to vector<1x256xi32>
    %31 = arith.cmpi slt, %5, %30 : vector<1x256xi32>
    %32 = arith.andi %29, %31 : vector<1x256xi1>
    %c-1_i32 = arith.constant -1 : i32
    %33 = vector.broadcast %c-1_i32 : i32 to vector<1x256xi32>
    %34 = arith.cmpi sge, %7, %33 : vector<1x256xi32>
    %c15_i32_9 = arith.constant 15 : i32
    %35 = vector.broadcast %c15_i32_9 : i32 to vector<1x256xi32>
    %36 = arith.cmpi slt, %7, %35 : vector<1x256xi32>
    %37 = arith.andi %34, %36 : vector<1x256xi1>
    %38 = arith.andi %32, %37 : vector<1x256xi1>
    %39 = arith.extui %38 : vector<1x256xi1> to vector<1x256xi32>
    %40 = arith.sitofp %39 : vector<1x256xi32> to vector<1x256xf32>
    %c1_i32_10 = arith.constant 1 : i32
    %41 = vector.broadcast %c1_i32_10 : i32 to vector<1x256xi32>
    %42 = arith.cmpi sge, %7, %41 : vector<1x256xi32>
    %c17_i32_11 = arith.constant 17 : i32
    %43 = vector.broadcast %c17_i32_11 : i32 to vector<1x256xi32>
    %44 = arith.cmpi slt, %7, %43 : vector<1x256xi32>
    %45 = arith.andi %42, %44 : vector<1x256xi1>
    %46 = arith.extui %45 : vector<1x256xi1> to vector<1x256xi32>
    %47 = arith.sitofp %46 : vector<1x256xi32> to vector<1x256xf32>
    %c-1_i32_12 = arith.constant -1 : i32
    %48 = vector.broadcast %c-1_i32_12 : i32 to vector<1x256xi32>
    %49 = arith.cmpi sge, %7, %48 : vector<1x256xi32>
    %c15_i32_13 = arith.constant 15 : i32
    %50 = vector.broadcast %c15_i32_13 : i32 to vector<1x256xi32>
    %51 = arith.cmpi slt, %7, %50 : vector<1x256xi32>
    %52 = arith.andi %49, %51 : vector<1x256xi1>
    %53 = arith.extui %52 : vector<1x256xi1> to vector<1x256xi32>
    %54 = arith.sitofp %53 : vector<1x256xi32> to vector<1x256xf32>
    %c-16_i32 = arith.constant -16 : i32
    %55 = vector.broadcast %c-16_i32 : i32 to vector<1x256xi32>
    %56 = arith.cmpi sge, %5, %55 : vector<1x256xi32>
    %c240_i32 = arith.constant 240 : i32
    %57 = vector.broadcast %c240_i32 : i32 to vector<1x256xi32>
    %58 = arith.cmpi slt, %5, %57 : vector<1x256xi32>
    %59 = arith.andi %56, %58 : vector<1x256xi1>
    %c1_i32_14 = arith.constant 1 : i32
    %60 = vector.broadcast %c1_i32_14 : i32 to vector<1x256xi32>
    %61 = arith.cmpi sge, %7, %60 : vector<1x256xi32>
    %c17_i32_15 = arith.constant 17 : i32
    %62 = vector.broadcast %c17_i32_15 : i32 to vector<1x256xi32>
    %63 = arith.cmpi slt, %7, %62 : vector<1x256xi32>
    %64 = arith.andi %61, %63 : vector<1x256xi1>
    %65 = arith.andi %59, %64 : vector<1x256xi1>
    %66 = arith.extui %65 : vector<1x256xi1> to vector<1x256xi32>
    %67 = arith.sitofp %66 : vector<1x256xi32> to vector<1x256xf32>
    %c-16_i32_16 = arith.constant -16 : i32
    %68 = vector.broadcast %c-16_i32_16 : i32 to vector<1x256xi32>
    %69 = arith.cmpi sge, %5, %68 : vector<1x256xi32>
    %c240_i32_17 = arith.constant 240 : i32
    %70 = vector.broadcast %c240_i32_17 : i32 to vector<1x256xi32>
    %71 = arith.cmpi slt, %5, %70 : vector<1x256xi32>
    %72 = arith.andi %69, %71 : vector<1x256xi1>
    %73 = arith.extui %72 : vector<1x256xi1> to vector<1x256xi32>
    %74 = arith.sitofp %73 : vector<1x256xi32> to vector<1x256xf32>
    %c-16_i32_18 = arith.constant -16 : i32
    %75 = vector.broadcast %c-16_i32_18 : i32 to vector<1x256xi32>
    %76 = arith.cmpi sge, %5, %75 : vector<1x256xi32>
    %c240_i32_19 = arith.constant 240 : i32
    %77 = vector.broadcast %c240_i32_19 : i32 to vector<1x256xi32>
    %78 = arith.cmpi slt, %5, %77 : vector<1x256xi32>
    %79 = arith.andi %76, %78 : vector<1x256xi1>
    %c-1_i32_20 = arith.constant -1 : i32
    %80 = vector.broadcast %c-1_i32_20 : i32 to vector<1x256xi32>
    %81 = arith.cmpi sge, %7, %80 : vector<1x256xi32>
    %c15_i32_21 = arith.constant 15 : i32
    %82 = vector.broadcast %c15_i32_21 : i32 to vector<1x256xi32>
    %83 = arith.cmpi slt, %7, %82 : vector<1x256xi32>
    %84 = arith.andi %81, %83 : vector<1x256xi1>
    %85 = arith.andi %79, %84 : vector<1x256xi1>
    %86 = arith.extui %85 : vector<1x256xi1> to vector<1x256xi32>
    %87 = arith.sitofp %86 : vector<1x256xi32> to vector<1x256xf32>
    %cst_22 = arith.constant 0.000000e+00 : f32
    %88 = vector.broadcast %cst_22 : f32 to vector<4x256xf32>
    %c0_23 = arith.constant 0 : index
    %c111 = arith.constant 111 : index
    %89 = vector.load %arg5[%c0_23, %c111] : memref<4x401xf32, #tpu.memory_space<vmem>>, vector<4x256xf32>
    %90 = vector.broadcast %20 : vector<1x256xf32> to vector<4x256xf32>
    %91 = arith.mulf %89, %90 : vector<4x256xf32>
    %c0_24 = arith.constant 0 : index
    %c0_25 = arith.constant 0 : index
    %92 = vector.load %arg2[%c0_24, %c0_25] : memref<4x9xf32, #tpu.memory_space<vmem>>, vector<4x1xf32>
    %93 = vector.broadcast %92 : vector<4x1xf32> to vector<4x256xf32>
    %94 = arith.mulf %93, %91 : vector<4x256xf32>
    %95 = arith.addf %88, %94 : vector<4x256xf32>
    %c0_26 = arith.constant 0 : index
    %c112 = arith.constant 112 : index
    %96 = vector.load %arg5[%c0_26, %c112] : memref<4x401xf32, #tpu.memory_space<vmem>>, vector<4x256xf32>
    %97 = vector.broadcast %27 : vector<1x256xf32> to vector<4x256xf32>
    %98 = arith.mulf %96, %97 : vector<4x256xf32>
    %c0_27 = arith.constant 0 : index
    %c1 = arith.constant 1 : index
    %99 = vector.load %arg2[%c0_27, %c1] : memref<4x9xf32, #tpu.memory_space<vmem>>, vector<4x1xf32>
    %100 = vector.broadcast %99 : vector<4x1xf32> to vector<4x256xf32>
    %101 = arith.mulf %100, %98 : vector<4x256xf32>
    %102 = arith.addf %95, %101 : vector<4x256xf32>
    %c0_28 = arith.constant 0 : index
    %c113 = arith.constant 113 : index
    %103 = vector.load %arg5[%c0_28, %c113] : memref<4x401xf32, #tpu.memory_space<vmem>>, vector<4x256xf32>
    %104 = vector.broadcast %40 : vector<1x256xf32> to vector<4x256xf32>
    %105 = arith.mulf %103, %104 : vector<4x256xf32>
    %c0_29 = arith.constant 0 : index
    %c2 = arith.constant 2 : index
    %106 = vector.load %arg2[%c0_29, %c2] : memref<4x9xf32, #tpu.memory_space<vmem>>, vector<4x1xf32>
    %107 = vector.broadcast %106 : vector<4x1xf32> to vector<4x256xf32>
    %108 = arith.mulf %107, %105 : vector<4x256xf32>
    %109 = arith.addf %102, %108 : vector<4x256xf32>
    %c0_30 = arith.constant 0 : index
    %c127 = arith.constant 127 : index
    %110 = vector.load %arg5[%c0_30, %c127] : memref<4x401xf32, #tpu.memory_space<vmem>>, vector<4x256xf32>
    %111 = vector.broadcast %47 : vector<1x256xf32> to vector<4x256xf32>
    %112 = arith.mulf %110, %111 : vector<4x256xf32>
    %c0_31 = arith.constant 0 : index
    %c3 = arith.constant 3 : index
    %113 = vector.load %arg2[%c0_31, %c3] : memref<4x9xf32, #tpu.memory_space<vmem>>, vector<4x1xf32>
    %114 = vector.broadcast %113 : vector<4x1xf32> to vector<4x256xf32>
    %115 = arith.mulf %114, %112 : vector<4x256xf32>
    %116 = arith.addf %109, %115 : vector<4x256xf32>
    %c0_32 = arith.constant 0 : index
    %c128_33 = arith.constant 128 : index
    %117 = vector.load %arg5[%c0_32, %c128_33] : memref<4x401xf32, #tpu.memory_space<vmem>>, vector<4x256xf32>
    %c0_34 = arith.constant 0 : index
    %c4 = arith.constant 4 : index
    %118 = vector.load %arg2[%c0_34, %c4] : memref<4x9xf32, #tpu.memory_space<vmem>>, vector<4x1xf32>
    %119 = vector.broadcast %118 : vector<4x1xf32> to vector<4x256xf32>
    %120 = arith.mulf %119, %117 : vector<4x256xf32>
    %121 = arith.addf %116, %120 : vector<4x256xf32>
    %c0_35 = arith.constant 0 : index
    %c129 = arith.constant 129 : index
    %122 = vector.load %arg5[%c0_35, %c129] : memref<4x401xf32, #tpu.memory_space<vmem>>, vector<4x256xf32>
    %123 = vector.broadcast %54 : vector<1x256xf32> to vector<4x256xf32>
    %124 = arith.mulf %122, %123 : vector<4x256xf32>
    %c0_36 = arith.constant 0 : index
    %c5 = arith.constant 5 : index
    %125 = vector.load %arg2[%c0_36, %c5] : memref<4x9xf32, #tpu.memory_space<vmem>>, vector<4x1xf32>
    %126 = vector.broadcast %125 : vector<4x1xf32> to vector<4x256xf32>
    %127 = arith.mulf %126, %124 : vector<4x256xf32>
    %128 = arith.addf %121, %127 : vector<4x256xf32>
    %c0_37 = arith.constant 0 : index
    %c143 = arith.constant 143 : index
    %129 = vector.load %arg5[%c0_37, %c143] : memref<4x401xf32, #tpu.memory_space<vmem>>, vector<4x256xf32>
    %130 = vector.broadcast %67 : vector<1x256xf32> to vector<4x256xf32>
    %131 = arith.mulf %129, %130 : vector<4x256xf32>
    %c0_38 = arith.constant 0 : index
    %c6 = arith.constant 6 : index
    %132 = vector.load %arg2[%c0_38, %c6] : memref<4x9xf32, #tpu.memory_space<vmem>>, vector<4x1xf32>
    %133 = vector.broadcast %132 : vector<4x1xf32> to vector<4x256xf32>
    %134 = arith.mulf %133, %131 : vector<4x256xf32>
    %135 = arith.addf %128, %134 : vector<4x256xf32>
    %c0_39 = arith.constant 0 : index
    %c144 = arith.constant 144 : index
    %136 = vector.load %arg5[%c0_39, %c144] : memref<4x401xf32, #tpu.memory_space<vmem>>, vector<4x256xf32>
    %137 = vector.broadcast %74 : vector<1x256xf32> to vector<4x256xf32>
    %138 = arith.mulf %136, %137 : vector<4x256xf32>
    %c0_40 = arith.constant 0 : index
    %c7 = arith.constant 7 : index
    %139 = vector.load %arg2[%c0_40, %c7] : memref<4x9xf32, #tpu.memory_space<vmem>>, vector<4x1xf32>
    %140 = vector.broadcast %139 : vector<4x1xf32> to vector<4x256xf32>
    %141 = arith.mulf %140, %138 : vector<4x256xf32>
    %142 = arith.addf %135, %141 : vector<4x256xf32>
    %c0_41 = arith.constant 0 : index
    %c145 = arith.constant 145 : index
    %143 = vector.load %arg5[%c0_41, %c145] : memref<4x401xf32, #tpu.memory_space<vmem>>, vector<4x256xf32>
    %144 = vector.broadcast %87 : vector<1x256xf32> to vector<4x256xf32>
    %145 = arith.mulf %143, %144 : vector<4x256xf32>
    %c0_42 = arith.constant 0 : index
    %c8 = arith.constant 8 : index
    %146 = vector.load %arg2[%c0_42, %c8] : memref<4x9xf32, #tpu.memory_space<vmem>>, vector<4x1xf32>
    %147 = vector.broadcast %146 : vector<4x1xf32> to vector<4x256xf32>
    %148 = arith.mulf %147, %145 : vector<4x256xf32>
    %149 = arith.addf %142, %148 : vector<4x256xf32>
    %c0_43 = arith.constant 0 : index
    %c0_44 = arith.constant 0 : index
    %150 = vector.load %arg3[%c0_43, %c0_44] : memref<8x4xf32, #tpu.memory_space<vmem>>, vector<8x4xf32>
    %cst_45 = arith.constant dense<0.000000e+00> : vector<8x256xf32>
    %151 = tpu.matmul %150, %149, %cst_45 {dimension_numbers = #tpu.dot_dimension_numbers<[1], [0], [0], [1], [0, 0, 1, 1], [], []>, precision = #tpu.contract_precision<fp32>} : vector<8x4xf32>, vector<4x256xf32>, vector<8x256xf32> -> vector<8x256xf32>
    %c0_46 = arith.constant 0 : index
    %c0_47 = arith.constant 0 : index
    %c0_48 = arith.constant 0 : index
    %152 = vector.load %arg4[%c0_46, %c0_47, %c0_48] : memref<1x8x256xf32, #tpu.memory_space<vmem>>, vector<1x8x256xf32>
    %153 = vector.shape_cast %152 : vector<1x8x256xf32> to vector<8x256xf32>
    %154 = vector.shape_cast %151 : vector<8x256xf32> to vector<1x8x256xf32>
    tpu.vector_store %arg4[%c0_46, %c0_47, %c0_48], %154 {strides = array<i32>} : memref<1x8x256xf32, #tpu.memory_space<vmem>>, vector<1x8x256xf32>,
    return
  }
  func.func @transform_0(%arg0: i32) -> (i32, i32, i32) {
    %c0_i32 = arith.constant 0 : i32
    %c0_i32_0 = arith.constant 0 : i32
    %c0_i32_1 = arith.constant 0 : i32
    return %arg0, %c0_i32, %c0_i32_0 : i32, i32, i32
  }
  func.func @transform_1(%arg0: i32) -> (i32, i32) {
    %c0_i32 = arith.constant 0 : i32
    %c0_i32_0 = arith.constant 0 : i32
    %c0_i32_1 = arith.constant 0 : i32
    return %c0_i32, %c0_i32_0 : i32, i32
  }
  func.func @transform_2(%arg0: i32) -> (i32, i32) {
    %c0_i32 = arith.constant 0 : i32
    %c0_i32_0 = arith.constant 0 : i32
    %c0_i32_1 = arith.constant 0 : i32
    return %c0_i32, %c0_i32_0 : i32, i32
  }
  func.func @transform_3(%arg0: i32) -> (i32, i32, i32) {
    %c0_i32 = arith.constant 0 : i32
    %c0_i32_0 = arith.constant 0 : i32
    %c0_i32_1 = arith.constant 0 : i32
    return %arg0, %c0_i32, %c0_i32_0 : i32, i32, i32
  }
}

</mosaic_0001>

<llo_original>
// kernel: separable_conv.1
$region0: #{separable_conv.1}
  #allocation0 [shape = 'u32[]', space=smem, size = 0x4, offset = 0x4, fixed_abs, tag = 'smem constant byte address 0x4 - core index']
  #allocation1 [shape = 'u32[144,128]{1,0:T(1,128)}', space=vmem, size = 0x12000, scoped, tag = 'internal scratch']
  #allocation2 [shape = 'f32[4,401]{1,0:T(4,128)}', space=vmem, size = 0x2000, scoped, tag = 'scratch operand']
  %s0 = inlined_call_operand.vmem [shape: f32[2,4,256], index: 0, kind: input, shape index: {}]
  %s1 = inlined_call_operand.vmem [shape: f32[4,9], index: 1, kind: input, shape index: {}]
  %s2 = inlined_call_operand.vmem [shape: f32[8,4], index: 2, kind: input, shape index: {}]
  %s3 = inlined_call_operand.vmem [shape: f32[2,8,256], index: 3, kind: output, shape index: {}]
  %s4 = sld [smem:[#allocation0]]
  $region45: #{separable_conv.1} parent=0
    _
  %s6 = ssub.s32 1, %s4
  %s7 = scalar_select 0, %s6, %s4
  loop: start=0, step=1, limit=4
  $region2: #{separable_conv.1} parent=0 // loop_pre_header
    _
  $region3: #{separable_conv.1} parent=0 // loop_header
    %s9 = sphi 0, %s13
    %p10 = scmp.ge.s32.totalorder %s9, 4
    %s19 = sphi 0, %s21
    %s22 = sphi 0, %s19
    %s23 = sphi 0, %s22
    %s39 = sphi 0, %s23
    %s43 = sphi 0, %s43
    %s45 = sphi 0, %s43
    %s46 = sphi 0, %s45
    %s60 = sphi 0, %s46
    %s64 = sphi 0, %s64
    %s66 = sphi 0, %s64
    %s67 = sphi 0, %s66
    %s81 = sphi 0, %s67
    %s87 = sphi 0, %s89
    %s90 = sphi 0, %s87
    %s91 = sphi 0, %s90
    %s107 = sphi 0, %s91
  $region4: #{separable_conv.1} parent=0 // loop_header_branch
    %12 = sbr.rel (%p10) target = $region8
  $region5: #{separable_conv.1} parent=0 // loop_body
    %s14 = ssub.s32 %s9, 1
    %s15 = ssub.s32 %s9, 2
    %s16 = sadd.s32 %s9, 1
    %s17 = ssub.s32 %s9, %s16
    %p18 = scmp.eq.s32.totalorder %s17, 0
    %s20 = sadd.s32 %s19, 1
    %s21 = scalar_select %p18, %s19, %s20
    %p24 = pneg %p18
    %p25 = scmp.eq.s32.totalorder %s9, 1
    %p26 = por %p24, %p25
    %p27 = scmp.ne.s32.totalorder %s19, %s22
    %p28 = scmp.eq.s32.totalorder %s9, 0
    %p29 = por %p27, %p28
    %p30 = scmp.ne.s32.totalorder %s19, %s22
    %p31 = scmp.eq.s32.totalorder %s14, 1
    %p32 = por %p30, %p31
    %p33 = scmp.ne.s32.totalorder %s22, %s23
    %p34 = scmp.eq.s32.totalorder %s14, 0
    %p35 = por %p33, %p34
    %p36 = scmp.ne.s32.totalorder %s22, %s23
    %p37 = scmp.eq.s32.totalorder %s15, 1
    %p38 = por %p36, %p37
    %p40 = scmp.ne.s32.totalorder %s23, %s39
    %p41 = scmp.eq.s32.totalorder %s15, 0
    %p42 = por %p40, %p41
    %s44 = sadd.s32 %s43, 1
    %p47 = scmp.eq.s32.totalorder %s9, 1
    %p48 = scmp.ne.s32.totalorder %s43, %s45
    %p49 = scmp.eq.s32.totalorder %s9, 0
    %p50 = por %p48, %p49
    %p51 = scmp.ne.s32.totalorder %s43, %s45
    %p52 = scmp.eq.s32.totalorder %s14, 1
    %p53 = por %p51, %p52
    %p54 = scmp.ne.s32.totalorder %s45, %s46
    %p55 = scmp.eq.s32.totalorder %s14, 0
    %p56 = por %p54, %p55
    %p57 = scmp.ne.s32.totalorder %s45, %s46
    %p58 = scmp.eq.s32.totalorder %s15, 1
    %p59 = por %p57, %p58
    %p61 = scmp.ne.s32.totalorder %s46, %s60
    %p62 = scmp.eq.s32.totalorder %s15, 0
    %p63 = por %p61, %p62
    %s65 = sadd.s32 %s64, 1
    %p68 = scmp.eq.s32.totalorder %s9, 1
    %p69 = scmp.ne.s32.totalorder %s64, %s66
    %p70 = scmp.eq.s32.totalorder %s9, 0
    %p71 = por %p69, %p70
    %p72 = scmp.ne.s32.totalorder %s64, %s66
    %p73 = scmp.eq.s32.totalorder %s14, 1
    %p74 = por %p72, %p73
    %p75 = scmp.ne.s32.totalorder %s66, %s67
    %p76 = scmp.eq.s32.totalorder %s14, 0
    %p77 = por %p75, %p76
    %p78 = scmp.ne.s32.totalorder %s66, %s67
    %p79 = scmp.eq.s32.totalorder %s15, 1
    %p80 = por %p78, %p79
    %p82 = scmp.ne.s32.totalorder %s67, %s81
    %p83 = scmp.eq.s32.totalorder %s15, 0
    %p84 = por %p82, %p83
    %s85 = ssub.s32 %s9, %s16
    %p86 = scmp.eq.s32.totalorder %s85, 0
    %s88 = sadd.s32 %s87, 1
    %s89 = scalar_select %p86, %s87, %s88
    %p92 = pneg %p86
    %p93 = scmp.eq.s32.totalorder %s9, 1
    %p94 = por %p92, %p93
    %p95 = scmp.ne.s32.totalorder %s87, %s90
    %p96 = scmp.eq.s32.totalorder %s9, 0
    %p97 = por %p95, %p96
    %p98 = scmp.ne.s32.totalorder %s87, %s90
    %p99 = scmp.eq.s32.totalorder %s14, 1
    %p100 = por %p98, %p99
    %p101 = scmp.ne.s32.totalorder %s90, %s91
    %p102 = scmp.eq.s32.totalorder %s14, 0
    %p103 = por %p101, %p102
    %p104 = scmp.ne.s32.totalorder %s90, %s91
    %p105 = scmp.eq.s32.totalorder %s15, 1
    %p106 = por %p104, %p105
    %p108 = scmp.ne.s32.totalorder %s91, %s107
    %p109 = scmp.eq.s32.totalorder %s15, 0
    %p110 = por %p108, %p109
    %p111 = scmp.le.s32.totalorder 1, %s9
    %p112 = scmp.lt.s32.totalorder %s9, 3
    %p113 = pnand %p111, %p112
    %p114 = pneg %p113
    // Predicated region
    $region9: #{separable_conv.1} parent=5 // pred_check
      _
    $region10: #{separable_conv.1} parent=5 // pred_check_branch
      %116 = sbr.rel (%p113) target = $region12
    $region11: #{separable_conv.1} parent=5 // pred_region
      %s117 = ssub.s32 %s9, 1
      // Predicated region
      $region13: #{separable_conv.1} parent=11 // pred_check
        %p118 = pneg %p56
      $region14: #{separable_conv.1} parent=11 // pred_check_branch
        %120 = sbr.rel (%p118) target = $region16
      $region15: #{separable_conv.1} parent=11 // pred_region
        _
      $region16: #{separable_conv.1} parent=11 // pred_fallthru
        _
      // Predicated region
      $region17: #{separable_conv.1} parent=11 // pred_check
        %p121 = pneg %p77
      $region18: #{separable_conv.1} parent=11 // pred_check_branch
        %123 = sbr.rel (%p121) target = $region20
      $region19: #{separable_conv.1} parent=11 // pred_region
        _
      $region20: #{separable_conv.1} parent=11 // pred_fallthru
        _
    $region12: #{separable_conv.1} parent=5 // pred_fallthru
      _
    %p124 = scmp.lt.s32.totalorder %s9, 2
    // Predicated region
    $region21: #{separable_conv.1} parent=5 // pred_check
      %p125 = pneg %p124
    $region22: #{separable_conv.1} parent=5 // pred_check_branch
      %127 = sbr.rel (%p125) target = $region24
    $region23: #{separable_conv.1} parent=5 // pred_region
      // Predicated region
      $region25: #{separable_conv.1} parent=23 // pred_check
        %p128 = pneg %p29
      $region26: #{separable_conv.1} parent=23 // pred_check_branch
        %130 = sbr.rel (%p128) target = $region28
      $region27: #{separable_conv.1} parent=23 // pred_region
        %p131 = scmp.lt.s32.totalorder %s9, 1
        %s132 = scalar_select %p131, %s9, 1
        %s133 = smul.addr %s132, 2
        %s134 = smul.addr %s133, 4
        %s135 = scalar_lea.vmem %s0, %s134
      $region28: #{separable_conv.1} parent=23 // pred_fallthru
        _
    $region24: #{separable_conv.1} parent=5 // pred_fallthru
      _
    %p136 = scmp.le.s32.totalorder 1, %s9
    %p137 = scmp.lt.s32.totalorder %s9, 3
    %p138 = pnand %p136, %p137
    %p139 = pneg %p138
    // Predicated region
    $region29: #{separable_conv.1} parent=5 // pred_check
      _
    $region30: #{separable_conv.1} parent=5 // pred_check_branch
      %141 = sbr.rel (%p138) target = $region32
    $region31: #{separable_conv.1} parent=5 // pred_region
      %s142 = ssub.s32 %s9, 1
      %p143 = scmp.lt.s32.totalorder %s14, 1
      %s144 = scalar_select %p143, %s14, 1
      %s145 = smul.addr %s144, 2
      %s146 = smul.addr %s145, 4
      %s147 = scalar_lea.vmem %s0, %s146
      %p148 = pneg %p35
      %p149 = pneg %p32
      %p150 = pneg %p56
      %p151 = pneg %p53
      %p152 = pneg %p77
      %p153 = pneg %p74
      %p154 = pneg %p103
      %p155 = pneg %p100
      %p156 = scmp.lt.s32.totalorder %s14, 1
      %s157 = scalar_select %p156, %s14, 1
      %s158 = smul.addr %s157, 2
      %s159 = smul.addr %s158, 8
      %s160 = scalar_lea.vmem %s3, %s159
      %p161 = scmp.lt.s32.totalorder %s14, 1
      %s162 = scalar_select %p161, %s14, 1
      %s163 = smul.addr %s162, 2
      %s164 = smul.addr %s163, 4
      %s165 = scalar_lea.vmem %s0, %s164
      %p166 = scmp.lt.s32.totalorder %s14, 1
      %s167 = scalar_select %p166, %s14, 1
      %s168 = smul.addr %s167, 2
      %s169 = smul.addr %s168, 8
      %s170 = scalar_lea.vmem %s3, %s169
      %171 = vst [vmem:[#allocation2] sm:$0xff] 0.0
      %vm172 = vcmask 1043456
      %vm173 = vcmask 138244
      %vm174 = vmor %vm173, %vm172
      %175 = vst.msk [vmem:[#allocation2 + $0x8] sm:$0xff] %vm174, 0.0
      %v176 = vld [vmem:[%s165] sm:$0xff]
      %177 = vst [vmem:[#allocation2 + $0x4] sm:$0xff] %v176
      %v178 = vlaneseq
      %v179 = vand.u32 %v178, 127
      %v180 = vadd.s32 %v179, 128
      %v181 = vand.u32 %v179, 15
      %v182 = vand.u32 %v180, 15
      %vm183 = vcmp.ge.s32.totalorder %v179, 16
      %vm184 = vcmp.ge.s32.totalorder %v180, 16
      %vm185 = vcmp.lt.s32.totalorder %v179, 272
      %vm186 = vcmp.lt.s32.totalorder %v180, 272
      %vm187 = vmand %vm183, %vm185
      %vm188 = vmand %vm184, %vm186
      %vm189 = vcmp.ge.s32.totalorder %v181, 1
      %vm190 = vcmp.ge.s32.totalorder %v182, 1
      %vm191 = vcmp.lt.s32.totalorder %v181, 17
      %vm192 = vcmp.lt.s32.totalorder %v182, 17
      %vm193 = vmand %vm189, %vm191
      %vm194 = vmand %vm190, %vm192
      %vm195 = vmand %vm187, %vm193
      %vm196 = vmand %vm188, %vm194
      %v197 = vsel %vm195, 1, 0
      %v198 = vsel %vm196, 1, 0
      %v199 = vcvt.s32.f32 %v197
      %v200 = vcvt.s32.f32 %v198
      %v201 = vsel %vm187, 1, 0
      %v202 = vsel %vm188, 1, 0
      %v203 = vcvt.s32.f32 %v201
      %v204 = vcvt.s32.f32 %v202
      %vm205 = vcmp.ge.s32.totalorder %v181, 4294967295
      %vm206 = vcmp.ge.s32.totalorder %v182, 4294967295
      %vm207 = vcmp.lt.s32.totalorder %v181, 15
      %vm208 = vcmp.lt.s32.totalorder %v182, 15
      %vm209 = vmand %vm205, %vm207
      %vm210 = vmand %vm206, %vm208
      %vm211 = vmand %vm187, %vm209
      %vm212 = vmand %vm188, %vm210
      %v213 = vsel %vm211, 1, 0
      %v214 = vsel %vm212, 1, 0
      %v215 = vcvt.s32.f32 %v213
      %v216 = vcvt.s32.f32 %v214
      %v217 = vsel %vm193, 1, 0
      %v218 = vsel %vm194, 1, 0
      %v219 = vcvt.s32.f32 %v217
      %v220 = vcvt.s32.f32 %v218
      %v221 = vsel %vm209, 1, 0
      %v222 = vsel %vm210, 1, 0
      %v223 = vcvt.s32.f32 %v221
      %v224 = vcvt.s32.f32 %v222
      %vm225 = vcmp.ge.s32.totalorder %v179, 4294967280
      %vm226 = vcmp.ge.s32.totalorder %v180, 4294967280
      %vm227 = vcmp.lt.s32.totalorder %v179, 240
      %vm228 = vcmp.lt.s32.totalorder %v180, 240
      %vm229 = vmand %vm225, %vm227
      %vm230 = vmand %vm226, %vm228
      %vm231 = vmand %vm229, %vm193
      %vm232 = vmand %vm230, %vm194
      %v233 = vsel %vm231, 1, 0
      %v234 = vsel %vm232, 1, 0
      %v235 = vcvt.s32.f32 %v233
      %v236 = vcvt.s32.f32 %v234
      %v237 = vsel %vm229, 1, 0
      %v238 = vsel %vm230, 1, 0
      %v239 = vcvt.s32.f32 %v237
      %v240 = vcvt.s32.f32 %v238
      %vm241 = vmand %vm229, %vm209
      %vm242 = vmand %vm230, %vm210
      %v243 = vsel %vm241, 1, 0
      %v244 = vsel %vm242, 1, 0
      %v245 = vcvt.s32.f32 %v243
      %v246 = vcvt.s32.f32 %v244
      %v247 = vld [vmem:[#allocation2] sm:$0xff]
      %v248 = vld [vmem:[#allocation2 + $0x8] sm:$0xf]
      %v251 = vcombine.low %v199, %v200
      %252 = vrot.lane.b32.xlu0 %v251, 111
      %v253 = vpop.permute.xlu0 %252
      %v254 = vrot.slane %v253, 4
      %vm255 = vcmask 908288
      %v256 = vsel %vm255, %v254, %v253
      %v259 = vmul.f32 %v247, %v256
      %v260 = vmul.f32 %v248, %v254
      %v261 = vld [vmem:[%s1] sm:$0xf]
      %263 = vset.pattern.permute.xlu0 0
      %264 = vperm.xlu0 %263, %v261
      %v265 = vpop.permute.xlu0 %264
      %v269 = vcombine.high %v259, %v259
      %270 = vrot.lane.b32.xlu0 %v259, 17
      %v271 = vpop.permute.xlu0 %270
      %272 = vrot.lane.b32.xlu0 %v269, 17
      %v273 = vpop.permute.xlu0 %272
      %274 = vrot.lane.b32.xlu0 %v260, 17
      %v275 = vpop.permute.xlu0 %274
      %vm276 = vcmask 138240
      %v277 = vsel %vm276, %v271, %v273
      %v278 = vsel %vm276, %v273, %v275
      %v281 = vmul.f32 %v265, %v277
      %v282 = vmul.f32 %v265, %v278
      %v283 = vadd.f32 %v281, 0.0
      %v284 = vadd.f32 %v282, 0.0
      %v285 = vld [vmem:[#allocation2] sm:$0xff]
      %v286 = vld [vmem:[#allocation2 + $0x8] sm:$0xf]
      %v289 = vcombine.low %v203, %v204
      %290 = vrot.lane.b32.xlu0 %v289, 112
      %v291 = vpop.permute.xlu0 %290
      %v292 = vrot.slane %v291, 4
      %vm293 = vcmask 916480
      %v294 = vsel %vm293, %v292, %v291
      %v297 = vmul.f32 %v285, %v294
      %v298 = vmul.f32 %v286, %v292
      %v299 = vld [vmem:[%s1] sm:$0xf]
      %301 = vset.pattern.permute.xlu0 1
      %302 = vperm.xlu0 %301, %v299
      %v303 = vpop.permute.xlu0 %302
      %v307 = vcombine.high %v297, %v297
      %308 = vrot.lane.b32.xlu0 %v297, 16
      %v309 = vpop.permute.xlu0 %308
      %310 = vrot.lane.b32.xlu0 %v307, 16
      %v311 = vpop.permute.xlu0 %310
      %312 = vrot.lane.b32.xlu0 %v298, 16
      %v313 = vpop.permute.xlu0 %312
      %vm314 = vcmask 130048
      %v315 = vsel %vm314, %v309, %v311
      %v316 = vsel %vm314, %v311, %v313
      %v319 = vmul.f32 %v303, %v315
      %v320 = vmul.f32 %v303, %v316
      %v321 = vadd.f32 %v283, %v319
      %v322 = vadd.f32 %v284, %v320
      %v323 = vld [vmem:[#allocation2] sm:$0xff]
      %v324 = vld [vmem:[#allocation2 + $0x8] sm:$0xf]
      %v327 = vcombine.low %v215, %v216
      %328 = vrot.lane.b32.xlu0 %v327, 113
      %v329 = vpop.permute.xlu0 %328
      %v330 = vrot.slane %v329, 4
      %vm331 = vcmask 924672
      %v332 = vsel %vm331, %v330, %v329
      %v335 = vmul.f32 %v323, %v332
      %v336 = vmul.f32 %v324, %v330
      %v337 = vld [vmem:[%s1] sm:$0xf]
      %339 = vset.pattern.permute.xlu0 2
      %340 = vperm.xlu0 %339, %v337
      %v341 = vpop.permute.xlu0 %340
      %v345 = vcombine.high %v335, %v335
      %346 = vrot.lane.b32.xlu0 %v335, 15
      %v347 = vpop.permute.xlu0 %346
      %348 = vrot.lane.b32.xlu0 %v345, 15
      %v349 = vpop.permute.xlu0 %348
      %350 = vrot.lane.b32.xlu0 %v336, 15
      %v351 = vpop.permute.xlu0 %350
      %vm352 = vcmask 121856
      %v353 = vsel %vm352, %v347, %v349
      %v354 = vsel %vm352, %v349, %v351
      %v357 = vmul.f32 %v341, %v353
      %v358 = vmul.f32 %v341, %v354
      %v359 = vadd.f32 %v321, %v357
      %v360 = vadd.f32 %v322, %v358
      %v361 = vld [vmem:[#allocation2] sm:$0xff]
      %v362 = vld [vmem:[#allocation2 + $0x8] sm:$0xf]
      %v365 = vcombine.low %v219, %v220
      %366 = vrot.lane.b32.xlu0 %v365, 127
      %v367 = vpop.permute.xlu0 %366
      %v368 = vrot.slane %v367, 4
      %vm369 = vcmask 1039360
      %v370 = vsel %vm369, %v368, %v367
      %v373 = vmul.f32 %v361, %v370
      %v374 = vmul.f32 %v362, %v368
      %v375 = vld [vmem:[%s1] sm:$0xf]
      %377 = vset.pattern.permute.xlu0 3
      %378 = vperm.xlu0 %377, %v375
      %v379 = vpop.permute.xlu0 %378
      %v383 = vcombine.high %v373, %v373
      %384 = vrot.lane.b32.xlu0 %v373, 1
      %v385 = vpop.permute.xlu0 %384
      %386 = vrot.lane.b32.xlu0 %v383, 1
      %v387 = vpop.permute.xlu0 %386
      %388 = vrot.lane.b32.xlu0 %v374, 1
      %v389 = vpop.permute.xlu0 %388
      %vm390 = vcmask 7168
      %v391 = vsel %vm390, %v385, %v387
      %v392 = vsel %vm390, %v387, %v389
      %v395 = vmul.f32 %v379, %v391
      %v396 = vmul.f32 %v379, %v392
      %v397 = vadd.f32 %v359, %v395
      %v398 = vadd.f32 %v360, %v396
      %v399 = vld [vmem:[#allocation2 + $0x4] sm:$0xff]
      %v400 = vld [vmem:[%s1] sm:$0xf]
      %402 = vset.pattern.permute.xlu0 4
      %403 = vperm.xlu0 %402, %v400
      %v404 = vpop.permute.xlu0 %403
      %v407 = vcombine.high %v399, %v399
      %v409 = vmul.f32 %v404, %v399
      %v410 = vmul.f32 %v404, %v407
      %v411 = vadd.f32 %v397, %v409
      %v412 = vadd.f32 %v398, %v410
      %v413 = vld [vmem:[#allocation2 + $0x4] sm:$0xff]
      %v414 = vld [vmem:[#allocation2 + $0xc] sm:$0xf]
      %v417 = vcombine.low %v223, %v224
      %418 = vrot.lane.b32.xlu0 %v417, 1
      %v419 = vpop.permute.xlu0 %418
      %v420 = vrot.slane %v419, 4
      %v421 = vsel %vm390, %v420, %v419
      %v424 = vmul.f32 %v413, %v421
      %v425 = vmul.f32 %v414, %v420
      %v426 = vld [vmem:[%s1] sm:$0xf]
      %428 = vset.pattern.permute.xlu0 5
      %429 = vperm.xlu0 %428, %v426
      %v430 = vpop.permute.xlu0 %429
      %v434 = vcombine.high %v424, %v424
      %435 = vrot.lane.b32.xlu0 %v424, 127
      %v436 = vpop.permute.xlu0 %435
      %437 = vrot.lane.b32.xlu0 %v434, 127
      %v438 = vpop.permute.xlu0 %437
      %439 = vrot.lane.b32.xlu0 %v425, 127
      %v440 = vpop.permute.xlu0 %439
      %v441 = vsel %vm369, %v436, %v438
      %v442 = vsel %vm369, %v438, %v440
      %v445 = vmul.f32 %v430, %v441
      %v446 = vmul.f32 %v430, %v442
      %v447 = vadd.f32 %v411, %v445
      %v448 = vadd.f32 %v412, %v446
      %v449 = vld [vmem:[#allocation2 + $0x4] sm:$0xff]
      %v450 = vld [vmem:[#allocation2 + $0xc] sm:$0xf]
      %v453 = vcombine.low %v235, %v236
      %454 = vrot.lane.b32.xlu0 %v453, 15
      %v455 = vpop.permute.xlu0 %454
      %v456 = vrot.slane %v455, 4
      %v457 = vsel %vm352, %v456, %v455
      %v460 = vmul.f32 %v449, %v457
      %v461 = vmul.f32 %v450, %v456
      %v462 = vld [vmem:[%s1] sm:$0xf]
      %464 = vset.pattern.permute.xlu0 6
      %465 = vperm.xlu0 %464, %v462
      %v466 = vpop.permute.xlu0 %465
      %v470 = vcombine.high %v460, %v460
      %471 = vrot.lane.b32.xlu0 %v460, 113
      %v472 = vpop.permute.xlu0 %471
      %473 = vrot.lane.b32.xlu0 %v470, 113
      %v474 = vpop.permute.xlu0 %473
      %475 = vrot.lane.b32.xlu0 %v461, 113
      %v476 = vpop.permute.xlu0 %475
      %v477 = vsel %vm331, %v472, %v474
      %v478 = vsel %vm331, %v474, %v476
      %v481 = vmul.f32 %v466, %v477
      %v482 = vmul.f32 %v466, %v478
      %v483 = vadd.f32 %v447, %v481
      %v484 = vadd.f32 %v448, %v482
      %v485 = vld [vmem:[#allocation2 + $0x4] sm:$0xff]
      %v486 = vld [vmem:[#allocation2 + $0xc] sm:$0xf]
      %v489 = vcombine.low %v239, %v240
      %490 = vrot.lane.b32.xlu0 %v489, 16
      %v491 = vpop.permute.xlu0 %490
      %v492 = vrot.slane %v491, 4
      %v493 = vsel %vm314, %v492, %v491
      %v496 = vmul.f32 %v485, %v493
      %v497 = vmul.f32 %v486, %v492
      %v498 = vld [vmem:[%s1] sm:$0xf]
      %500 = vset.pattern.permute.xlu0 7
      %501 = vperm.xlu0 %500, %v498
      %v502 = vpop.permute.xlu0 %501
      %v506 = vcombine.high %v496, %v496
      %507 = vrot.lane.b32.xlu0 %v496, 112
      %v508 = vpop.permute.xlu0 %507
      %509 = vrot.lane.b32.xlu0 %v506, 112
      %v510 = vpop.permute.xlu0 %509
      %511 = vrot.lane.b32.xlu0 %v497, 112
      %v512 = vpop.permute.xlu0 %511
      %v513 = vsel %vm293, %v508, %v510
      %v514 = vsel %vm293, %v510, %v512
      %v517 = vmul.f32 %v502, %v513
      %v518 = vmul.f32 %v502, %v514
      %v519 = vadd.f32 %v483, %v517
      %v520 = vadd.f32 %v484, %v518
      %v521 = vld [vmem:[#allocation2 + $0x4] sm:$0xff]
      %v522 = vld [vmem:[#allocation2 + $0xc] sm:$0xf]
      %v525 = vcombine.low %v245, %v246
      %526 = vrot.lane.b32.xlu0 %v525, 17
      %v527 = vpop.permute.xlu0 %526
      %v528 = vrot.slane %v527, 4
      %v529 = vsel %vm276, %v528, %v527
      %v532 = vmul.f32 %v521, %v529
      %v533 = vmul.f32 %v522, %v528
      %v534 = vld [vmem:[%s1] sm:$0xf]
      %536 = vset.pattern.permute.xlu0 8
      %537 = vperm.xlu0 %536, %v534
      %v538 = vpop.permute.xlu0 %537
      %v542 = vcombine.high %v532, %v532
      %543 = vrot.lane.b32.xlu0 %v532, 111
      %v544 = vpop.permute.xlu0 %543
      %545 = vrot.lane.b32.xlu0 %v542, 111
      %v546 = vpop.permute.xlu0 %545
      %547 = vrot.lane.b32.xlu0 %v533, 111
      %v548 = vpop.permute.xlu0 %547
      %v549 = vsel %vm255, %v544, %v546
      %v550 = vsel %vm255, %v546, %v548
      %v553 = vmul.f32 %v538, %v549
      %v554 = vmul.f32 %v538, %v550
      %v555 = vadd.f32 %v519, %v553
      %v556 = vadd.f32 %v520, %v554
      %v557 = vld [vmem:[%s2] sm:$0xff]
      %vm558 = vcmask 31744
      %v560 = vsel %vm558, %v557, 0
      %v563 = vsel %vm172, %v555, 0
      %v566 = vsel %vm172, %v556, 0
      %568 = vmatprep.subr.mxu0 0.0
      %569 = vmatpush1.msra.mxu0 0.0
      %570 = vmatprep.subr.mxu0 0.0
      %571 = vmatpush1.msra.mxu0 0.0
      %572 = vmatprep.subr.mxu0 0.0
      %573 = vmatpush1.msra.mxu0 0.0
      %574 = vmatprep.subr.mxu0 0.0
      %575 = vmatpush1.msra.mxu0 0.0
      %576 = vmatprep.subr.mxu0 0.0
      %577 = vmatpush1.msra.mxu0 0.0
      %578 = vmatprep.subr.mxu0 0.0
      %579 = vmatpush1.msra.mxu0 0.0
      %580 = vmatprep.subr.mxu0 0.0
      %581 = vmatpush1.msra.mxu0 0.0
      %582 = vmatprep.subr.mxu0 0.0
      %583 = vmatpush1.msra.mxu0 0.0
      %584 = vmatprep.subr.mxu0 0.0
      %585 = vmatpush1.msra.mxu0 0.0
      %586 = vmatprep.subr.mxu0 0.0
      %587 = vmatpush1.msra.mxu0 0.0
      %588 = vmatprep.subr.mxu0 0.0
      %589 = vmatpush1.msra.mxu0 0.0
      %590 = vmatprep.subr.mxu0 0.0
      %591 = vmatpush1.msra.mxu0 0.0
      %592 = vmatprep.subr.mxu0 0.0
      %593 = vmatpush1.msra.mxu0 0.0
      %594 = vmatprep.subr.mxu0 0.0
      %595 = vmatpush1.msra.mxu0 0.0
      %596 = vmatprep.subr.mxu0 0.0
      %597 = vmatpush1.msra.mxu0 0.0
      %v598 = vand.u32 %v566, 4294901760
      %599 = vmatprep.subr.mxu0 %v598
      %v600 = vand.u32 %v563, 4294901760
      %601 = vmatpush1.msra.mxu0 %v600
      %602 = vmatprep.subr.mxu0 0.0
      %603 = vmatpush2.msra.mxu0 0.0
      %604 = vmatprep.subr.mxu0 0.0
      %605 = vmatpush2.msra.mxu0 0.0
      %606 = vmatprep.subr.mxu0 0.0
      %607 = vmatpush2.msra.mxu0 0.0
      %608 = vmatprep.subr.mxu0 0.0
      %609 = vmatpush2.msra.mxu0 0.0
      %610 = vmatprep.subr.mxu0 0.0
      %611 = vmatpush2.msra.mxu0 0.0
      %612 = vmatprep.subr.mxu0 0.0
      %613 = vmatpush2.msra.mxu0 0.0
      %614 = vmatprep.subr.mxu0 0.0
      %615 = vmatpush2.msra.mxu0 0.0
      %616 = vmatprep.subr.mxu0 0.0
      %617 = vmatpush2.msra.mxu0 0.0
      %618 = vmatprep.subr.mxu0 0.0
      %619 = vmatpush2.msra.mxu0 0.0
      %620 = vmatprep.subr.mxu0 0.0
      %621 = vmatpush2.msra.mxu0 0.0
      %622 = vmatprep.subr.mxu0 0.0
      %623 = vmatpush2.msra.mxu0 0.0
      %624 = vmatprep.subr.mxu0 0.0
      %625 = vmatpush2.msra.mxu0 0.0
      %626 = vmatprep.subr.mxu0 0.0
      %627 = vmatpush2.msra.mxu0 0.0
      %628 = vmatprep.subr.mxu0 0.0
      %629 = vmatpush2.msra.mxu0 0.0
      %630 = vmatprep.subr.mxu0 0.0
      %631 = vmatpush2.msra.mxu0 0.0
      %632 = vmatprep.subr.mxu0 0.0
      %633 = vmatpush2.msra.mxu0 0.0
      %634 = vmatprep.mubr.f32.mxu0 0.0
      %v635 = vand.u32 %v560, 4294901760
      %v636 = vsub.f32 %v560, %v635
      %v637 = vand.u32 %v636, 4294901760
      %v638 = vsub.f32 %v636, %v637
      %v639 = vand.u32 %v638, 4294901760
      %640 = vmatmul.mubr.f32.gmra.mxu0 %v639
      %v641 = vpop.f32.mrf.mxu0
      %v642 = vadd.f32 0.0, %v641
      %v643 = vpop.f32.mrf.mxu0
      %v644 = vadd.f32 0.0, %v643
      %645 = vdwg.mxu0
      %646 = vmatprep.subr.mxu0 0.0
      %647 = vmatpush1.msra.mxu0 0.0
      %648 = vmatprep.subr.mxu0 0.0
      %649 = vmatpush1.msra.mxu0 0.0
      %650 = vmatprep.subr.mxu0 0.0
      %651 = vmatpush1.msra.mxu0 0.0
      %652 = vmatprep.subr.mxu0 0.0
      %653 = vmatpush1.msra.mxu0 0.0
      %654 = vmatprep.subr.mxu0 0.0
      %655 = vmatpush1.msra.mxu0 0.0
      %656 = vmatprep.subr.mxu0 0.0
      %657 = vmatpush1.msra.mxu0 0.0
      %658 = vmatprep.subr.mxu0 0.0
      %659 = vmatpush1.msra.mxu0 0.0
      %660 = vmatprep.subr.mxu0 0.0
      %661 = vmatpush1.msra.mxu0 0.0
      %662 = vmatprep.subr.mxu0 0.0
      %663 = vmatpush1.msra.mxu0 0.0
      %664 = vmatprep.subr.mxu0 0.0
      %665 = vmatpush1.msra.mxu0 0.0
      %666 = vmatprep.subr.mxu0 0.0
      %667 = vmatpush1.msra.mxu0 0.0
      %668 = vmatprep.subr.mxu0 0.0
      %669 = vmatpush1.msra.mxu0 0.0
      %670 = vmatprep.subr.mxu0 0.0
      %671 = vmatpush1.msra.mxu0 0.0
      %672 = vmatprep.subr.mxu0 0.0
      %673 = vmatpush1.msra.mxu0 0.0
      %674 = vmatprep.subr.mxu0 0.0
      %675 = vmatpush1.msra.mxu0 0.0
      %v676 = vand.u32 %v566, 4294901760
      %v677 = vsub.f32 %v566, %v676
      %v678 = vand.u32 %v677, 4294901760
      %v679 = vsub.f32 %v677, %v678
      %v680 = vand.u32 %v679, 4294901760
      %681 = vmatprep.subr.mxu0 %v680
      %v682 = vand.u32 %v563, 4294901760
      %v683 = vsub.f32 %v563, %v682
      %v684 = vand.u32 %v683, 4294901760
      %v685 = vsub.f32 %v683, %v684
      %v686 = vand.u32 %v685, 4294901760
      %687 = vmatpush1.msra.mxu0 %v686
      %688 = vmatprep.subr.mxu0 0.0
      %689 = vmatpush2.msra.mxu0 0.0
      %690 = vmatprep.subr.mxu0 0.0
      %691 = vmatpush2.msra.mxu0 0.0
      %692 = vmatprep.subr.mxu0 0.0
      %693 = vmatpush2.msra.mxu0 0.0
      %694 = vmatprep.subr.mxu0 0.0
      %695 = vmatpush2.msra.mxu0 0.0
      %696 = vmatprep.subr.mxu0 0.0
      %697 = vmatpush2.msra.mxu0 0.0
      %698 = vmatprep.subr.mxu0 0.0
      %699 = vmatpush2.msra.mxu0 0.0
      %700 = vmatprep.subr.mxu0 0.0
      %701 = vmatpush2.msra.mxu0 0.0
      %702 = vmatprep.subr.mxu0 0.0
      %703 = vmatpush2.msra.mxu0 0.0
      %704 = vmatprep.subr.mxu0 0.0
      %705 = vmatpush2.msra.mxu0 0.0
      %706 = vmatprep.subr.mxu0 0.0
      %707 = vmatpush2.msra.mxu0 0.0
      %708 = vmatprep.subr.mxu0 0.0
      %709 = vmatpush2.msra.mxu0 0.0
      %710 = vmatprep.subr.mxu0 0.0
      %711 = vmatpush2.msra.mxu0 0.0
      %712 = vmatprep.subr.mxu0 0.0
      %713 = vmatpush2.msra.mxu0 0.0
      %714 = vmatprep.subr.mxu0 0.0
      %715 = vmatpush2.msra.mxu0 0.0
      %716 = vmatprep.subr.mxu0 0.0
      %717 = vmatpush2.msra.mxu0 0.0
      %718 = vmatprep.subr.mxu0 0.0
      %719 = vmatpush2.msra.mxu0 0.0
      %720 = vmatprep.mubr.f32.mxu0 0.0
      %v721 = vand.u32 %v560, 4294901760
      %722 = vmatmul.mubr.f32.gmra.mxu0 %v721
      %v723 = vpop.f32.mrf.mxu0
      %v724 = vadd.f32 %v642, %v723
      %v725 = vpop.f32.mrf.mxu0
      %v726 = vadd.f32 %v644, %v725
      %727 = vdwg.mxu0
      %728 = vmatprep.subr.mxu0 0.0
      %729 = vmatpush1.msra.mxu0 0.0
      %730 = vmatprep.subr.mxu0 0.0
      %731 = vmatpush1.msra.mxu0 0.0
      %732 = vmatprep.subr.mxu0 0.0
      %733 = vmatpush1.msra.mxu0 0.0
      %734 = vmatprep.subr.mxu0 0.0
      %735 = vmatpush1.msra.mxu0 0.0
      %736 = vmatprep.subr.mxu0 0.0
      %737 = vmatpush1.msra.mxu0 0.0
      %738 = vmatprep.subr.mxu0 0.0
      %739 = vmatpush1.msra.mxu0 0.0
      %740 = vmatprep.subr.mxu0 0.0
      %741 = vmatpush1.msra.mxu0 0.0
      %742 = vmatprep.subr.mxu0 0.0
      %743 = vmatpush1.msra.mxu0 0.0
      %744 = vmatprep.subr.mxu0 0.0
      %745 = vmatpush1.msra.mxu0 0.0
      %746 = vmatprep.subr.mxu0 0.0
      %747 = vmatpush1.msra.mxu0 0.0
      %748 = vmatprep.subr.mxu0 0.0
      %749 = vmatpush1.msra.mxu0 0.0
      %750 = vmatprep.subr.mxu0 0.0
      %751 = vmatpush1.msra.mxu0 0.0
      %752 = vmatprep.subr.mxu0 0.0
      %753 = vmatpush1.msra.mxu0 0.0
      %754 = vmatprep.subr.mxu0 0.0
      %755 = vmatpush1.msra.mxu0 0.0
      %756 = vmatprep.subr.mxu0 0.0
      %757 = vmatpush1.msra.mxu0 0.0
      %v758 = vand.u32 %v566, 4294901760
      %v759 = vsub.f32 %v566, %v758
      %760 = vmatprep.subr.mxu0 %v759
      %v761 = vand.u32 %v563, 4294901760
      %v762 = vsub.f32 %v563, %v761
      %763 = vmatpush1.msra.mxu0 %v762
      %764 = vmatprep.subr.mxu0 0.0
      %765 = vmatpush2.msra.mxu0 0.0
      %766 = vmatprep.subr.mxu0 0.0
      %767 = vmatpush2.msra.mxu0 0.0
      %768 = vmatprep.subr.mxu0 0.0
      %769 = vmatpush2.msra.mxu0 0.0
      %770 = vmatprep.subr.mxu0 0.0
      %771 = vmatpush2.msra.mxu0 0.0
      %772 = vmatprep.subr.mxu0 0.0
      %773 = vmatpush2.msra.mxu0 0.0
      %774 = vmatprep.subr.mxu0 0.0
      %775 = vmatpush2.msra.mxu0 0.0
      %776 = vmatprep.subr.mxu0 0.0
      %777 = vmatpush2.msra.mxu0 0.0
      %778 = vmatprep.subr.mxu0 0.0
      %779 = vmatpush2.msra.mxu0 0.0
      %780 = vmatprep.subr.mxu0 0.0
      %781 = vmatpush2.msra.mxu0 0.0
      %782 = vmatprep.subr.mxu0 0.0
      %783 = vmatpush2.msra.mxu0 0.0
      %784 = vmatprep.subr.mxu0 0.0
      %785 = vmatpush2.msra.mxu0 0.0
      %786 = vmatprep.subr.mxu0 0.0
      %787 = vmatpush2.msra.mxu0 0.0
      %788 = vmatprep.subr.mxu0 0.0
      %789 = vmatpush2.msra.mxu0 0.0
      %790 = vmatprep.subr.mxu0 0.0
      %791 = vmatpush2.msra.mxu0 0.0
      %792 = vmatprep.subr.mxu0 0.0
      %793 = vmatpush2.msra.mxu0 0.0
      %794 = vmatprep.subr.mxu0 0.0
      %795 = vmatpush2.msra.mxu0 0.0
      %796 = vmatprep.mubr.f32.mxu0 0.0
      %v797 = vand.u32 %v560, 4294901760
      %v798 = vsub.f32 %v560, %v797
      %799 = vmatmul.mubr.f32.gmra.mxu0 %v798
      %v800 = vpop.f32.mrf.mxu0
      %v801 = vadd.f32 %v724, %v800
      %v802 = vpop.f32.mrf.mxu0
      %v803 = vadd.f32 %v726, %v802
      %804 = vdwg.mxu0
      %805 = vmatprep.subr.mxu0 0.0
      %806 = vmatpush1.msra.mxu0 0.0
      %807 = vmatprep.subr.mxu0 0.0
      %808 = vmatpush1.msra.mxu0 0.0
      %809 = vmatprep.subr.mxu0 0.0
      %810 = vmatpush1.msra.mxu0 0.0
      %811 = vmatprep.subr.mxu0 0.0
      %812 = vmatpush1.msra.mxu0 0.0
      %813 = vmatprep.subr.mxu0 0.0
      %814 = vmatpush1.msra.mxu0 0.0
      %815 = vmatprep.subr.mxu0 0.0
      %816 = vmatpush1.msra.mxu0 0.0
      %817 = vmatprep.subr.mxu0 0.0
      %818 = vmatpush1.msra.mxu0 0.0
      %819 = vmatprep.subr.mxu0 0.0
      %820 = vmatpush1.msra.mxu0 0.0
      %821 = vmatprep.subr.mxu0 0.0
      %822 = vmatpush1.msra.mxu0 0.0
      %823 = vmatprep.subr.mxu0 0.0
      %824 = vmatpush1.msra.mxu0 0.0
      %825 = vmatprep.subr.mxu0 0.0
      %826 = vmatpush1.msra.mxu0 0.0
      %827 = vmatprep.subr.mxu0 0.0
      %828 = vmatpush1.msra.mxu0 0.0
      %829 = vmatprep.subr.mxu0 0.0
      %830 = vmatpush1.msra.mxu0 0.0
      %831 = vmatprep.subr.mxu0 0.0
      %832 = vmatpush1.msra.mxu0 0.0
      %833 = vmatprep.subr.mxu0 0.0
      %834 = vmatpush1.msra.mxu0 0.0
      %v835 = vand.u32 %v566, 4294901760
      %836 = vmatprep.subr.mxu0 %v835
      %v837 = vand.u32 %v563, 4294901760
      %838 = vmatpush1.msra.mxu0 %v837
      %839 = vmatprep.subr.mxu0 0.0
      %840 = vmatpush2.msra.mxu0 0.0
      %841 = vmatprep.subr.mxu0 0.0
      %842 = vmatpush2.msra.mxu0 0.0
      %843 = vmatprep.subr.mxu0 0.0
      %844 = vmatpush2.msra.mxu0 0.0
      %845 = vmatprep.subr.mxu0 0.0
      %846 = vmatpush2.msra.mxu0 0.0
      %847 = vmatprep.subr.mxu0 0.0
      %848 = vmatpush2.msra.mxu0 0.0
      %849 = vmatprep.subr.mxu0 0.0
      %850 = vmatpush2.msra.mxu0 0.0
      %851 = vmatprep.subr.mxu0 0.0
      %852 = vmatpush2.msra.mxu0 0.0
      %853 = vmatprep.subr.mxu0 0.0
      %854 = vmatpush2.msra.mxu0 0.0
      %855 = vmatprep.subr.mxu0 0.0
      %856 = vmatpush2.msra.mxu0 0.0
      %857 = vmatprep.subr.mxu0 0.0
      %858 = vmatpush2.msra.mxu0 0.0
      %859 = vmatprep.subr.mxu0 0.0
      %860 = vmatpush2.msra.mxu0 0.0
      %861 = vmatprep.subr.mxu0 0.0
      %862 = vmatpush2.msra.mxu0 0.0
      %863 = vmatprep.subr.mxu0 0.0
      %864 = vmatpush2.msra.mxu0 0.0
      %865 = vmatprep.subr.mxu0 0.0
      %866 = vmatpush2.msra.mxu0 0.0
      %867 = vmatprep.subr.mxu0 0.0
      %868 = vmatpush2.msra.mxu0 0.0
      %869 = vmatprep.subr.mxu0 0.0
      %870 = vmatpush2.msra.mxu0 0.0
      %871 = vmatprep.mubr.f32.mxu0 0.0
      %v872 = vand.u32 %v560, 4294901760
      %v873 = vsub.f32 %v560, %v872
      %v874 = vand.u32 %v873, 4294901760
      %875 = vmatmul.mubr.f32.gmra.mxu0 %v874
      %v876 = vpop.f32.mrf.mxu0
      %v877 = vadd.f32 %v801, %v876
      %v878 = vpop.f32.mrf.mxu0
      %v879 = vadd.f32 %v803, %v878
      %880 = vdwg.mxu0
      %881 = vmatprep.subr.mxu0 0.0
      %882 = vmatpush1.msra.mxu0 0.0
      %883 = vmatprep.subr.mxu0 0.0
      %884 = vmatpush1.msra.mxu0 0.0
      %885 = vmatprep.subr.mxu0 0.0
      %886 = vmatpush1.msra.mxu0 0.0
      %887 = vmatprep.subr.mxu0 0.0
      %888 = vmatpush1.msra.mxu0 0.0
      %889 = vmatprep.subr.mxu0 0.0
      %890 = vmatpush1.msra.mxu0 0.0
      %891 = vmatprep.subr.mxu0 0.0
      %892 = vmatpush1.msra.mxu0 0.0
      %893 = vmatprep.subr.mxu0 0.0
      %894 = vmatpush1.msra.mxu0 0.0
      %895 = vmatprep.subr.mxu0 0.0
      %896 = vmatpush1.msra.mxu0 0.0
      %897 = vmatprep.subr.mxu0 0.0
      %898 = vmatpush1.msra.mxu0 0.0
      %899 = vmatprep.subr.mxu0 0.0
      %900 = vmatpush1.msra.mxu0 0.0
      %901 = vmatprep.subr.mxu0 0.0
      %902 = vmatpush1.msra.mxu0 0.0
      %903 = vmatprep.subr.mxu0 0.0
      %904 = vmatpush1.msra.mxu0 0.0
      %905 = vmatprep.subr.mxu0 0.0
      %906 = vmatpush1.msra.mxu0 0.0
      %907 = vmatprep.subr.mxu0 0.0
      %908 = vmatpush1.msra.mxu0 0.0
      %909 = vmatprep.subr.mxu0 0.0
      %910 = vmatpush1.msra.mxu0 0.0
      %v911 = vand.u32 %v566, 4294901760
      %v912 = vsub.f32 %v566, %v911
      %v913 = vand.u32 %v912, 4294901760
      %914 = vmatprep.subr.mxu0 %v913
      %v915 = vand.u32 %v563, 4294901760
      %v916 = vsub.f32 %v563, %v915
      %v917 = vand.u32 %v916, 4294901760
      %918 = vmatpush1.msra.mxu0 %v917
      %919 = vmatprep.subr.mxu0 0.0
      %920 = vmatpush2.msra.mxu0 0.0
      %921 = vmatprep.subr.mxu0 0.0
      %922 = vmatpush2.msra.mxu0 0.0
      %923 = vmatprep.subr.mxu0 0.0
      %924 = vmatpush2.msra.mxu0 0.0
      %925 = vmatprep.subr.mxu0 0.0
      %926 = vmatpush2.msra.mxu0 0.0
      %927 = vmatprep.subr.mxu0 0.0
      %928 = vmatpush2.msra.mxu0 0.0
      %929 = vmatprep.subr.mxu0 0.0
      %930 = vmatpush2.msra.mxu0 0.0
      %931 = vmatprep.subr.mxu0 0.0
      %932 = vmatpush2.msra.mxu0 0.0
      %933 = vmatprep.subr.mxu0 0.0
      %934 = vmatpush2.msra.mxu0 0.0
      %935 = vmatprep.subr.mxu0 0.0
      %936 = vmatpush2.msra.mxu0 0.0
      %937 = vmatprep.subr.mxu0 0.0
      %938 = vmatpush2.msra.mxu0 0.0
      %939 = vmatprep.subr.mxu0 0.0
      %940 = vmatpush2.msra.mxu0 0.0
      %941 = vmatprep.subr.mxu0 0.0
      %942 = vmatpush2.msra.mxu0 0.0
      %943 = vmatprep.subr.mxu0 0.0
      %944 = vmatpush2.msra.mxu0 0.0
      %945 = vmatprep.subr.mxu0 0.0
      %946 = vmatpush2.msra.mxu0 0.0
      %947 = vmatprep.subr.mxu0 0.0
      %948 = vmatpush2.msra.mxu0 0.0
      %949 = vmatprep.subr.mxu0 0.0
      %950 = vmatpush2.msra.mxu0 0.0
      %951 = vmatprep.mubr.f32.mxu0 0.0
      %v952 = vand.u32 %v560, 4294901760
      %953 = vmatmul.mubr.f32.gmra.mxu0 %v952
      %v954 = vpop.f32.mrf.mxu0
      %v955 = vadd.f32 %v877, %v954
      %v956 = vpop.f32.mrf.mxu0
      %v957 = vadd.f32 %v879, %v956
      %958 = vdwg.mxu0
      %959 = vmatprep.subr.mxu0 0.0
      %960 = vmatpush1.msra.mxu0 0.0
      %961 = vmatprep.subr.mxu0 0.0
      %962 = vmatpush1.msra.mxu0 0.0
      %963 = vmatprep.subr.mxu0 0.0
      %964 = vmatpush1.msra.mxu0 0.0
      %965 = vmatprep.subr.mxu0 0.0
      %966 = vmatpush1.msra.mxu0 0.0
      %967 = vmatprep.subr.mxu0 0.0
      %968 = vmatpush1.msra.mxu0 0.0
      %969 = vmatprep.subr.mxu0 0.0
      %970 = vmatpush1.msra.mxu0 0.0
      %971 = vmatprep.subr.mxu0 0.0
      %972 = vmatpush1.msra.mxu0 0.0
      %973 = vmatprep.subr.mxu0 0.0
      %974 = vmatpush1.msra.mxu0 0.0
      %975 = vmatprep.subr.mxu0 0.0
      %976 = vmatpush1.msra.mxu0 0.0
      %977 = vmatprep.subr.mxu0 0.0
      %978 = vmatpush1.msra.mxu0 0.0
      %979 = vmatprep.subr.mxu0 0.0
      %980 = vmatpush1.msra.mxu0 0.0
      %981 = vmatprep.subr.mxu0 0.0
      %982 = vmatpush1.msra.mxu0 0.0
      %983 = vmatprep.subr.mxu0 0.0
      %984 = vmatpush1.msra.mxu0 0.0
      %985 = vmatprep.subr.mxu0 0.0
      %986 = vmatpush1.msra.mxu0 0.0
      %987 = vmatprep.subr.mxu0 0.0
      %988 = vmatpush1.msra.mxu0 0.0
      %v989 = vand.u32 %v566, 4294901760
      %990 = vmatprep.subr.mxu0 %v989
      %v991 = vand.u32 %v563, 4294901760
      %992 = vmatpush1.msra.mxu0 %v991
      %993 = vmatprep.subr.mxu0 0.0
      %994 = vmatpush2.msra.mxu0 0.0
      %995 = vmatprep.subr.mxu0 0.0
      %996 = vmatpush2.msra.mxu0 0.0
      %997 = vmatprep.subr.mxu0 0.0
      %998 = vmatpush2.msra.mxu0 0.0
      %999 = vmatprep.subr.mxu0 0.0
      %1000 = vmatpush2.msra.mxu0 0.0
      %1001 = vmatprep.subr.mxu0 0.0
      %1002 = vmatpush2.msra.mxu0 0.0
      %1003 = vmatprep.subr.mxu0 0.0
      %1004 = vmatpush2.msra.mxu0 0.0
      %1005 = vmatprep.subr.mxu0 0.0
      %1006 = vmatpush2.msra.mxu0 0.0
      %1007 = vmatprep.subr.mxu0 0.0
      %1008 = vmatpush2.msra.mxu0 0.0
      %1009 = vmatprep.subr.mxu0 0.0
      %1010 = vmatpush2.msra.mxu0 0.0
      %1011 = vmatprep.subr.mxu0 0.0
      %1012 = vmatpush2.msra.mxu0 0.0
      %1013 = vmatprep.subr.mxu0 0.0
      %1014 = vmatpush2.msra.mxu0 0.0
      %1015 = vmatprep.subr.mxu0 0.0
      %1016 = vmatpush2.msra.mxu0 0.0
      %1017 = vmatprep.subr.mxu0 0.0
      %1018 = vmatpush2.msra.mxu0 0.0
      %1019 = vmatprep.subr.mxu0 0.0
      %1020 = vmatpush2.msra.mxu0 0.0
      %1021 = vmatprep.subr.mxu0 0.0
      %1022 = vmatpush2.msra.mxu0 0.0
      %1023 = vmatprep.subr.mxu0 0.0
      %1024 = vmatpush2.msra.mxu0 0.0
      %1025 = vmatprep.mubr.f32.mxu0 0.0
      %v1026 = vand.u32 %v560, 4294901760
      %1027 = vmatmul.mubr.f32.gmra.mxu0 %v1026
      %v1028 = vpop.f32.mrf.mxu0
      %v1029 = vadd.f32 %v955, %v1028
      %v1030 = vpop.f32.mrf.mxu0
      %v1031 = vadd.f32 %v957, %v1030
      %1032 = vdwg.mxu0
      %1033 = vst [vmem:[%s170] sm:$0xff] %v1029
      %1034 = vst [vmem:[%s170 + $0x8] sm:$0xff] %v1031
      %p1035 = scmp.lt.s32.totalorder %s14, 1
      %s1036 = scalar_select %p1035, %s14, 1
      %s1037 = smul.addr %s1036, 2
      %s1038 = smul.addr %s1037, 8
      %s1039 = scalar_lea.vmem %s3, %s1038
      // Predicated region
      $region33: #{separable_conv.1} parent=31 // pred_check
        %p1040 = pneg %p100
      $region34: #{separable_conv.1} parent=31 // pred_check_branch
        %1042 = sbr.rel (%p1040) target = $region36
      $region35: #{separable_conv.1} parent=31 // pred_region
        _
      $region36: #{separable_conv.1} parent=31 // pred_fallthru
        _
    $region32: #{separable_conv.1} parent=5 // pred_fallthru
      _
    %p1043 = scmp.le.s32.totalorder 2, %s9
    // Predicated region
    $region37: #{separable_conv.1} parent=5 // pred_check
      %p1044 = pneg %p1043
    $region38: #{separable_conv.1} parent=5 // pred_check_branch
      %1046 = sbr.rel (%p1044) target = $region40
    $region39: #{separable_conv.1} parent=5 // pred_region
      %s1047 = ssub.s32 %s9, 2
      // Predicated region
      $region41: #{separable_conv.1} parent=39 // pred_check
        %p1048 = pneg %p106
      $region42: #{separable_conv.1} parent=39 // pred_check_branch
        %1050 = sbr.rel (%p1048) target = $region44
      $region43: #{separable_conv.1} parent=39 // pred_region
        %p1051 = scmp.lt.s32.totalorder %s15, 1
        %s1052 = scalar_select %p1051, %s15, 1
        %s1053 = smul.addr %s1052, 2
        %s1054 = smul.addr %s1053, 8
        %s1055 = scalar_lea.vmem %s3, %s1054
      $region44: #{separable_conv.1} parent=39 // pred_fallthru
        _
    $region40: #{separable_conv.1} parent=5 // pred_fallthru
      _
  $region6: #{separable_conv.1} parent=0 // loop_footer
    %s13 = sadd.s32 1, %s9
  $region7: #{separable_conv.1} parent=0 // loop_footer_branch
    %8 = sbr.rel target = $region3
  $region8: #{separable_conv.1} parent=0 // loop_exit
    _

</llo_original>
